<compile_context>
chip_gen: v6e
topology: v6e:2x2x1
jax: 0.10.0
libtpu: 0.0.40
codegen_flags: <defaults>
</compile_context>

<pallas_src>
import jax
import jax.numpy as jnp
from jax.experimental import pallas as pl
from jax.experimental.pallas import tpu as pltpu

_LANES = 128


def _h_swish_kernel(x_ref, o_ref):
    # h_sigmoid(x) = relu6(x + 3) / 6 ; h_swish(x) = x * h_sigmoid(x)
    # Compute in f32 regardless of input dtype (free: DMA-bound kernel).
    x = x_ref[...].astype(jnp.float32)
    y = x * (jnp.clip(x + 3.0, 0.0, 6.0) * (1.0 / 6.0))
    o_ref[...] = y.astype(o_ref.dtype)


def _ceil_div(a, b):
    return -(-a // b)


def _round_up(a, b):
    return _ceil_div(a, b) * b


def _chip_defaults():
    """Return (target_block_bytes, min_grid_blocks) tuned per TPU generation."""
    try:
        kind = jax.devices()[0].device_kind.lower().replace(" ", "")
    except Exception:  # no devices / interpret mode
        kind = ""
    if "v7" in kind or "tpu7" in kind:
        # v7x: 2 TensorCores, ~3.2 TB/s HBM.  4 MiB blocks (16 MiB footprint,
        # < 32 MiB default scoped VMEM); >= 2 grid steps per core for overlap.
        return 4 * 1024 * 1024, 4
    if "v6" in kind:
        # v6e: single TC, 32 MiB default scoped VMEM.
        return 4 * 1024 * 1024, 1
    # v5e & unknown: stay inside the 16 MiB default scoped-VMEM budget.
    return 2 * 1024 * 1024, 1


def h_swish(x: jax.Array, *, target_block_bytes: int | None = None,
            donate: bool = False) -> jax.Array:
    """Elementwise hard-swish via a tiled, bandwidth-oriented Pallas TPU kernel.

    donate=True aliases the input buffer as the output (only do this if the
    caller no longer needs x, otherwise XLA inserts a defensive copy).
    """
    if not jnp.issubdtype(x.dtype, jnp.floating):
        raise TypeError(f"h_swish expects a floating dtype, got {x.dtype}")

    orig_shape = x.shape
    dtype = x.dtype
    n = x.size
    if n == 0:
        return x

    itemsize = x.dtype.itemsize
    # Packed-sublane multiple: 8 for f32, 16 for bf16/f16, 32 for 8-bit types.
    sub = max(8, 32 // max(1, itemsize))

    auto_bytes, min_grid = _chip_defaults()
    if target_block_bytes is None:
        target_block_bytes = auto_bytes

    cost = pl.CostEstimate(flops=5 * n, transcendentals=0,
                           bytes_accessed=2 * n * itemsize)
    cparams = pltpu.CompilerParams(dimension_semantics=("parallel",))
    aliases = {0: 0} if donate else {}

    if n % _LANES == 0:
        # ---- Lane-dense 2-D path (free reshape, full (8,128) vreg I/O) ----
        rows = n // _LANES
        x2d = x.reshape(rows, _LANES)

        block_rows = max(sub, (target_block_bytes // (_LANES * itemsize)) // sub * sub)
        if min_grid > 1 and rows >= min_grid * sub:
            # v7x: >= 2 pipelined grid steps per TensorCore.
            block_rows = min(block_rows, _round_up(_ceil_div(rows, min_grid), sub))
        block_rows = min(block_rows, rows)  # full-dim block is always legal

        grid = (_ceil_div(rows, block_rows),)
        out = pl.pallas_call(
            _h_swish_kernel,
            out_shape=jax.ShapeDtypeStruct((rows, _LANES), dtype),
            grid_spec=pltpu.PrefetchScalarGridSpec(
                num_scalar_prefetch=0,
                grid=grid,
                in_specs=[pl.BlockSpec((block_rows, _LANES), lambda i: (i, 0))],
                out_specs=pl.BlockSpec((block_rows, _LANES), lambda i: (i, 0)),
            ),
            compiler_params=cparams,
            cost_estimate=cost,
            input_output_aliases=aliases,
        )(x2d)
        return out.reshape(orig_shape)

    # ---- Ragged path: un-padded flat 1-D view, partial last block masked ----
    # No zero-pad/concat on the way in and no slice on the way out: the edge
    # block's out-of-bounds lanes are garbage on load and masked on store,
    # which is harmless for an elementwise op.
    xf = x.reshape(-1)
    tile = sub * _LANES  # dense 1-D tile: 1024 elems for f32, 2048 for bf16
    block = max(tile, (target_block_bytes // itemsize) // tile * tile)
    if min_grid > 1 and n >= min_grid * tile:
        block = min(block, _round_up(_ceil_div(n, min_grid), tile))
    if block >= n:
        block = n  # single block spanning the full (ragged) array is legal

    grid = (_ceil_div(n, block),)
    out = pl.pallas_call(
        _h_swish_kernel,
        out_shape=jax.ShapeDtypeStruct((n,), dtype),
        grid_spec=pltpu.PrefetchScalarGridSpec(
            num_scalar_prefetch=0,
            grid=grid,
            in_specs=[pl.BlockSpec((block,), lambda i: (i,))],
            out_specs=pl.BlockSpec((block,), lambda i: (i,)),
        ),
        compiler_params=cparams,
        cost_estimate=cost,
        input_output_aliases=aliases,
    )(xf)
    return out.reshape(orig_shape)


def _h_swish_ref(x):
    xf = x.astype(jnp.float32)
    return (xf * (jnp.clip(xf + 3.0, 0.0, 6.0) * (1.0 / 6.0))).astype(x.dtype)


if __name__ == "__main__":
    key = jax.random.PRNGKey(0)

    # 1) NCHW activations (PyTorch module's typical usage), 128-divisible path.
    x = jax.random.normal(key, (2, 4, 16, 16), dtype=jnp.float32) * 4.0
    y = h_swish(x)
    jax.block_until_ready(y)
    assert y.shape == x.shape and y.dtype == x.dtype
    assert jnp.allclose(y, _h_swish_ref(x), atol=1e-6, rtol=1e-6)

    # 2) Ragged (non-128-divisible) path -- no pad, masked partial last block.
    x2 = jax.random.normal(jax.random.PRNGKey(1), (3, 5, 7, 11), dtype=jnp.float32) * 4.0
    y2 = h_swish(x2)
    jax.block_until_ready(y2)
    assert y2.shape == x2.shape and y2.dtype == x2.dtype
    assert jnp.allclose(y2, _h_swish_ref(x2), atol=1e-6, rtol=1e-6)

    # 3) Multi-block 2-D grid with a masked trailing row-block.
    x3 = jax.random.normal(jax.random.PRNGKey(2), (1, 3, 100, 160), dtype=jnp.float32) * 4.0
    y3 = h_swish(x3, target_block_bytes=64 * 1024)
    jax.block_until_ready(y3)
    assert jnp.allclose(y3, _h_swish_ref(x3), atol=1e-6, rtol=1e-6)

    # 4) Multi-block ragged 1-D grid with a masked trailing block.
    x4 = jax.random.normal(jax.random.PRNGKey(3), (10, 500), dtype=jnp.float32) * 4.0
    y4 = h_swish(x4, target_block_bytes=8 * 1024)
    jax.block_until_ready(y4)
    assert jnp.allclose(y4, _h_swish_ref(x4), atol=1e-6, rtol=1e-6)

    print("KERNEL_OK")
</pallas_src>

<mosaic_0001>
module attributes {stable_mosaic.version = 11 : i64} {
  func.func @_h_swish_kernel(%arg0: i32, %arg1: memref<16x128xf32, #tpu.memory_space<vmem>>, %arg2: memref<16x128xf32, #tpu.memory_space<vmem>>) attributes {dimension_semantics = [#tpu.dimension_semantics<parallel>], iteration_bounds = array<i64: 1>, scalar_prefetch = 0 : i64, scratch_operands = 0 : i64, tpu.core_type = #tpu.core_type<tc>, window_params = [{transform_indices = @transform_0, window_bounds = array<i64: 16, 128>}, {transform_indices = @transform_1, window_bounds = array<i64: 16, 128>}]} {
    %c0 = arith.constant 0 : index
    %c0_0 = arith.constant 0 : index
    %0 = vector.load %arg1[%c0, %c0_0] : memref<16x128xf32, #tpu.memory_space<vmem>>, vector<16x128xf32>
    %cst = arith.constant 3.000000e+00 : f32
    %1 = vector.broadcast %cst : f32 to vector<16x128xf32>
    %2 = arith.addf %0, %1 : vector<16x128xf32>
    %cst_1 = arith.constant 0.000000e+00 : f32
    %cst_2 = arith.constant 6.000000e+00 : f32
    %3 = vector.broadcast %cst_1 : f32 to vector<16x128xf32>
    %4 = arith.maximumf %3, %2 : vector<16x128xf32>
    %5 = vector.broadcast %cst_2 : f32 to vector<16x128xf32>
    %6 = arith.minimumf %5, %4 : vector<16x128xf32>
    %cst_3 = arith.constant 0.166666672 : f32
    %7 = vector.broadcast %cst_3 : f32 to vector<16x128xf32>
    %8 = arith.mulf %6, %7 : vector<16x128xf32>
    %9 = arith.mulf %0, %8 : vector<16x128xf32>
    %c0_4 = arith.constant 0 : index
    %c0_5 = arith.constant 0 : index
    %10 = vector.load %arg2[%c0_4, %c0_5] : memref<16x128xf32, #tpu.memory_space<vmem>>, vector<16x128xf32>
    tpu.vector_store %arg2[%c0_4, %c0_5], %9 {strides = array<i32>} : memref<16x128xf32, #tpu.memory_space<vmem>>, vector<16x128xf32>,
    return
  }
  func.func @transform_0(%arg0: i32) -> (i32, i32) {
    %c0_i32 = arith.constant 0 : i32
    %c0_i32_0 = arith.constant 0 : i32
    return %arg0, %c0_i32 : i32, i32
  }
  func.func @transform_1(%arg0: i32) -> (i32, i32) {
    %c0_i32 = arith.constant 0 : i32
    %c0_i32_0 = arith.constant 0 : i32
    return %arg0, %c0_i32 : i32, i32
  }
}

</mosaic_0001>

<llo_original>
// kernel: tpu_custom_call.1
$region0: #{tpu_custom_call.1}
  #allocation0 [shape = 'u32[]', space=smem, size = 0x4, offset = 0x4, fixed_abs, tag = 'smem constant byte address 0x4 - core index']
  #allocation1 [shape = 'u32[144,128]{1,0:T(1,128)}', space=vmem, size = 0x12000, scoped, tag = 'internal scratch']
  %s0 = inlined_call_operand.hbm [shape: f32[16,128], index: 0, kind: input, shape index: {}]
  %s1 = inlined_call_operand.hbm [shape: f32[16,128], index: 1, kind: output, shape index: {}]
  %s2 = sld [smem:[#allocation0]]
  $region18: #{tpu_custom_call.1} parent=0
    _
  %s4 = ssub.s32 1, %s2
  %s5 = scalar_select 0, %s4, %s2
  $region1: #{tpu_custom_call.1} parent=0
    #allocation2 [shape = 'u8[8192]{0}', space=vmem, size = 0x2000, scoped, tag = 'input window, operand 0, single buffered']
    #allocation3 [shape = 's32[1]{0}', space=sflag, size = 0x4, scoped, tag = 'scoped memory for tpu_custom_call.1']
    #allocation4 [shape = 's32[1]{0}', space=sflag, size = 0x4, scoped, tag = 'scoped memory for tpu_custom_call.1']
    #allocation5 [shape = 'u8[8192]{0}', space=vmem, size = 0x2000, scoped, tag = 'output window, operand 0, single buffered']
    %6 = vsyncpa [#allocation3], 0
    %7 = vsyncpa [#allocation4], 0
    // Predicated region
    $region2: #{tpu_custom_call.1} parent=1 // pred_check
      _
    $region3: #{tpu_custom_call.1} parent=1 // pred_check_branch
      %9 = sbr.rel (0) target = $region5
    $region4: #{tpu_custom_call.1} parent=1 // pred_region
      %s11 = ssub.s32 256, 256
      %12 = vsyncadd [#allocation3], %s11
      %s13 = sshll.u32 [#allocation2], 4
      %s14 = int_to_ptr.vmem [resolvable:$true] %s13
      %19 = dma.hbm_to_vmem [thread:$0]  %s0, 256, %s14, [#allocation3], 128, 128, 8
    $region5: #{tpu_custom_call.1} parent=1 // pred_fallthru
      _
    // Predicated region
    $region6: #{tpu_custom_call.1} parent=1 // pred_check
      _
    $region7: #{tpu_custom_call.1} parent=1 // pred_check_branch
      %21 = sbr.rel (0) target = $region9
    $region8: #{tpu_custom_call.1} parent=1 // pred_region
      %22 = dma.done [#allocation3], 256
    $region9: #{tpu_custom_call.1} parent=1 // pred_fallthru
      _
    %v23 = vld [vmem:[#allocation2] sm:$0xff]
    %v24 = vld [vmem:[#allocation2 + $0x8] sm:$0xff]
    %v25 = vadd.f32 %v23, 3.0
    %v26 = vadd.f32 %v24, 3.0
    %v27 = vmax.f32 %v25, 0.0
    %v28 = vmax.f32 %v26, 0.0
    %v29 = vmin.f32 %v27, 6.0
    %v30 = vmin.f32 %v28, 6.0
    %v31 = vmul.f32 %v29, 0.16666667
    %v32 = vmul.f32 %v30, 0.16666667
    %v33 = vmul.f32 %v23, %v31
    %v34 = vmul.f32 %v24, %v32
    %35 = vst [vmem:[#allocation5] sm:$0xff] %v33
    %36 = vst [vmem:[#allocation5 + $0x8] sm:$0xff] %v34
    // Predicated region
    $region10: #{tpu_custom_call.1} parent=1 // pred_check
      _
    $region11: #{tpu_custom_call.1} parent=1 // pred_check_branch
      %38 = sbr.rel (0) target = $region13
    $region12: #{tpu_custom_call.1} parent=1 // pred_region
      %s40 = ssub.s32 256, 256
      %41 = vsyncadd [#allocation4], %s40
      %s42 = sshll.u32 [#allocation5], 4
      %s43 = int_to_ptr.vmem [resolvable:$true] %s42
      %48 = dma.vmem_to_hbm [thread:$0]  %s43, 256, %s1, [#allocation4], 128, 128, 8
    $region13: #{tpu_custom_call.1} parent=1 // pred_fallthru
      _
    // Predicated region
    $region14: #{tpu_custom_call.1} parent=1 // pred_check
      _
    $region15: #{tpu_custom_call.1} parent=1 // pred_check_branch
      %50 = sbr.rel (0) target = $region17
    $region16: #{tpu_custom_call.1} parent=1 // pred_region
      %51 = dma.done [#allocation4], 256
    $region17: #{tpu_custom_call.1} parent=1 // pred_fallthru
      _
    %52 = vsyncpa [#allocation3], 1
    %53 = vsyncpa [#allocation4], 1

</llo_original>
